<compile_context>
chip_gen: v5e
topology: v5e:2x2
jax: 0.10.0
libtpu: 0.0.40
codegen_flags: <defaults>
</compile_context>

<pallas_src>
import math

import jax
import jax.numpy as jnp
import numpy as np
from jax.experimental import pallas as pl
from jax.experimental.pallas import tpu as pltpu

_HALF_LOG_2PI = 0.5 * math.log(2.0 * math.pi)


def _softplus(x):
    # numerically-stable softplus, identical formula in kernel and reference
    return jnp.maximum(x, 0.0) + jnp.log1p(jnp.exp(-jnp.abs(x)))


def _scrub(x):
    # torch: where(isnan, 0, x) then where(isinf, 0, x).
    # abs(x) < inf is False for both NaN and +/-Inf, so one compare covers both.
    return jnp.where(jnp.abs(x) < jnp.inf, x, 0.0)


def _sac_manifold_kernel(yT_ref, epsT_ref, w1_ref, b1_ref, w2_ref, b2_ref,
                         w3_ref, b3_ref, out_ref):
    """Transposed (feature-on-sublane, batch-on-lane) fused forward for one batch tile."""
    D = epsT_ref.shape[0]

    y = yT_ref[...]                                                    # (D, TB) bf16
    # Layer 1: all three heads fused into one (HP, D) @ (D, TB) matmul; bias added in-kernel
    # (free VPU op hidden under MXU latency) instead of a wrapper-side ones-column concat.
    h1 = jnp.maximum(
        jnp.dot(w1_ref[...], y, preferred_element_type=jnp.float32) + b1_ref[...], 0.0)
    # Layer 2: block-diagonal (HP, HP) keeps the three heads independent.
    h2 = jnp.maximum(
        jnp.dot(w2_ref[...], h1.astype(jnp.bfloat16),
                preferred_element_type=jnp.float32) + b2_ref[...], 0.0)
    # Layer 3: rows of z = [mean_raw (D) | log_std (D) | value (1)].
    z = jnp.dot(w3_ref[...], h2.astype(jnp.bfloat16),
                preferred_element_type=jnp.float32) + b3_ref[...]      # (2D+1, TB) f32

    mean = _scrub(jnp.tanh(z[0:D, :]))        # actor_mean tail: Tanh, then NaN/Inf -> 0
    log_std = _scrub(z[D:2 * D, :])           # NaN/Inf -> 0
    std = _softplus(log_std)                  # > 0 by construction
    # TODO(synk): torch's runtime `assert torch.all(std > 0)` has no in-kernel equivalent.

    eps = epsT_ref[...]                       # (D, TB) f32 — elementwise tail stays f32
    x_t = mean + std * eps                    # Normal(mean, std).rsample()
    y_t = jnp.tanh(x_t)                       # action

    # Normal.log_prob(x_t) = -(x_t-mean)^2/(2 std^2) - log(std) - 0.5*log(2*pi).
    # (x_t - mean) == std * eps exactly as computed, so the quadratic term is -0.5*eps^2:
    # saves a divide/sub/two muls per element and avoids inf if softplus underflows.
    log_prob = (-0.5 * (eps * eps) - jnp.log(std) - _HALF_LOG_2PI
                - jnp.log(1.0 - y_t * y_t + 1e-6))
    log_prob = jnp.sum(log_prob, axis=0, keepdims=True)                # (1, TB) sublane sum

    # Single fused (D+2, TB) output slab: rows = [action | log_prob | value].
    out_ref[0:D, :] = y_t
    out_ref[D:D + 1, :] = log_prob
    out_ref[D + 1:D + 2, :] = z[2 * D:2 * D + 1, :]                    # critic value


def prepare_fused_params(params):
    """Build the fused / transposed / padded weights ONCE per parameter set.

    Kernel layout (batch rides the lane axis, so weights are stored transposed):
      w1: (HP, D)     rows = [mean | log_std | critic | zero-pad], bf16
      w2: (HP, HP)    block-diagonal, zero-padded, bf16
      w3: (2D+1, HP)  rows = [mean (D) | log_std (D) | value (1)], bf16
      b*: f32 column vectors, added in-kernel after the f32-accumulated matmuls.
    HP = 3H rounded up to a multiple of 128 (clean (8,128) tiling, unmasked loads).
    """
    (mw1, mb1), (mw2, mb2), (mw3, mb3) = params["actor_mean"]
    (sw1, sb1), (sw2, sb2), (sw3, sb3) = params["actor_log_std"]
    (cw1, cb1), (cw2, cb2), (cw3, cb3) = params["critic"]

    D, H = mw1.shape
    HP = ((3 * H + 127) // 128) * 128

    T = lambda w: jnp.asarray(w, jnp.float32).T
    col = lambda b: jnp.asarray(b, jnp.float32).reshape(-1, 1)

    w1 = jnp.zeros((HP, D), jnp.float32)
    w1 = w1.at[0:H].set(T(mw1)).at[H:2 * H].set(T(sw1)).at[2 * H:3 * H].set(T(cw1))
    b1 = jnp.zeros((HP, 1), jnp.float32)
    b1 = b1.at[0:H].set(col(mb1)).at[H:2 * H].set(col(sb1)).at[2 * H:3 * H].set(col(cb1))

    w2 = jnp.zeros((HP, HP), jnp.float32)
    w2 = (w2.at[0:H, 0:H].set(T(mw2))
             .at[H:2 * H, H:2 * H].set(T(sw2))
             .at[2 * H:3 * H, 2 * H:3 * H].set(T(cw2)))
    b2 = jnp.zeros((HP, 1), jnp.float32)
    b2 = b2.at[0:H].set(col(mb2)).at[H:2 * H].set(col(sb2)).at[2 * H:3 * H].set(col(cb2))

    Dout = 2 * D + 1
    w3 = jnp.zeros((Dout, HP), jnp.float32)
    w3 = (w3.at[0:D, 0:H].set(T(mw3))
             .at[D:2 * D, H:2 * H].set(T(sw3))
             .at[2 * D:Dout, 2 * H:3 * H].set(T(cw3)))
    b3 = jnp.concatenate([col(mb3), col(sb3), col(cb3)], axis=0)

    # TODO(synk): if H grows far beyond this toy size, replace the (3H,3H) block-diagonal
    # layer 2 with three (H,H) matmuls (the block-diag scales quadratically in VMEM/FLOPs).
    return {"w1": w1.astype(jnp.bfloat16), "b1": b1,
            "w2": w2.astype(jnp.bfloat16), "b2": b2,
            "w3": w3.astype(jnp.bfloat16), "b3": b3}


def _pick_block_b(B):
    # Largest lane-aligned batch tile that divides B; fall back to the whole batch
    # (small / ragged B). Tiles this size keep VMEM use tiny on v5e/v6e/v7x.
    for cand in (2048, 1024, 512, 256, 128):
        if B % cand == 0:
            return cand
    return B


@jax.jit
def sac_manifold_forward(y, fused, eps):
    """Pallas equivalent of SAC_Manifold.forward(y) -> (action, log_prob, value).

    `fused` comes from prepare_fused_params (built once per parameter set);
    `eps` is pre-generated standard-normal noise standing in for Normal.rsample().
    """
    y = jnp.asarray(y, jnp.float32)
    eps = jnp.asarray(eps, jnp.float32)
    B, D = y.shape
    HP = fused["w2"].shape[0]

    # Batch-on-lanes layout: (D, B) operands; matmul input in bf16, noise stays f32.
    yT = y.T.astype(jnp.bfloat16)
    epsT = eps.T

    block_b = _pick_block_b(B)
    grid = (B // block_b,)

    out = pl.pallas_call(
        _sac_manifold_kernel,
        out_shape=jax.ShapeDtypeStruct((D + 2, B), jnp.float32),
        grid=grid,
        in_specs=[
            pl.BlockSpec((D, block_b), lambda i: (0, i)),        # yT   : batch-tiled
            pl.BlockSpec((D, block_b), lambda i: (0, i)),        # epsT : batch-tiled
            pl.BlockSpec((HP, D), lambda i: (0, 0)),             # fused weights stay
            pl.BlockSpec((HP, 1), lambda i: (0, 0)),             # VMEM-resident across
            pl.BlockSpec((HP, HP), lambda i: (0, 0)),            # all grid steps
            pl.BlockSpec((HP, 1), lambda i: (0, 0)),
            pl.BlockSpec((2 * D + 1, HP), lambda i: (0, 0)),
            pl.BlockSpec((2 * D + 1, 1), lambda i: (0, 0)),
        ],
        out_specs=pl.BlockSpec((D + 2, block_b), lambda i: (0, i)),
        compiler_params=pltpu.CompilerParams(
            dimension_semantics=("parallel",)),   # shards batch over v7x's 2 TCs
    )(yT, epsT, fused["w1"], fused["b1"], fused["w2"], fused["b2"],
      fused["w3"], fused["b3"])

    action = out[0:D, :].T                 # (B, D)
    log_prob = out[D:D + 1, :].T           # (B, 1)
    value = out[D + 1:D + 2, :].T          # (B, 1)
    return action, log_prob, value


def init_params(key, input_dim, hidden_dim):
    """Deterministic init matching the PyTorch layer shapes (W stored as (in, out))."""
    def linear(k, fan_in, fan_out):
        kw, kb = jax.random.split(k)
        bound = 1.0 / np.sqrt(fan_in)
        W = jax.random.uniform(kw, (fan_in, fan_out), jnp.float32, -bound, bound)
        b = jax.random.uniform(kb, (1, fan_out), jnp.float32, -bound, bound)
        return W, b

    keys = jax.random.split(key, 9)
    critic = [linear(keys[0], input_dim, hidden_dim),
              linear(keys[1], hidden_dim, hidden_dim),
              linear(keys[2], hidden_dim, 1)]
    actor_mean = [linear(keys[3], input_dim, hidden_dim),
                  linear(keys[4], hidden_dim, hidden_dim),
                  linear(keys[5], hidden_dim, input_dim)]
    actor_log_std = [linear(keys[6], input_dim, hidden_dim),
                     linear(keys[7], hidden_dim, hidden_dim),
                     linear(keys[8], hidden_dim, input_dim)]
    return {"critic": critic, "actor_mean": actor_mean, "actor_log_std": actor_log_std}


def reference_forward(y, params, eps):
    """Pure-JAX reference mirroring SAC_Manifold.forward semantics (f32 HIGHEST matmuls)."""
    relu = lambda x: jnp.maximum(x, 0.0)
    ident = lambda x: x

    def mlp(layers, acts, x):
        for (W, b), act in zip(layers, acts):
            x = act(jnp.dot(x, W, precision=jax.lax.Precision.HIGHEST) + b)
        return x

    mean = mlp(params["actor_mean"], [relu, relu, jnp.tanh], y)
    mean = jnp.where(jnp.isnan(mean), 0.0, mean)
    mean = jnp.where(jnp.isinf(mean), 0.0, mean)
    log_std = mlp(params["actor_log_std"], [relu, relu, ident], y)
    log_std = jnp.where(jnp.isnan(log_std), 0.0, log_std)
    log_std = jnp.where(jnp.isinf(log_std), 0.0, log_std)

    std = _softplus(log_std)
    x_t = mean + std * eps
    y_t = jnp.tanh(x_t)

    log_prob = (-((x_t - mean) ** 2) / (2.0 * std * std)
                - jnp.log(std) - _HALF_LOG_2PI)
    log_prob = log_prob - jnp.log(1.0 - y_t * y_t + 1e-6)
    log_prob = jnp.sum(log_prob, axis=1, keepdims=True)

    value = mlp(params["critic"], [relu, relu, ident], y)
    return y_t, log_prob, value


if __name__ == "__main__":
    D, H = 4, 32   # input_dim, hidden_dim

    key = jax.random.PRNGKey(0)
    k_par, k_y, k_eps, k_y2, k_eps2 = jax.random.split(key, 5)

    params = init_params(k_par, D, H)
    fused = prepare_fused_params(params)   # hoisted: built once per parameter set

    def run_and_check(B, ky, keps):
        y = jax.random.normal(ky, (B, D), jnp.float32)
        # pre-generated standard-normal noise standing in for Normal.rsample()
        eps = jax.random.normal(keps, (B, D), jnp.float32)

        action, log_prob, value = jax.block_until_ready(
            sac_manifold_forward(y, fused, eps))
        ref_action, ref_logprob, ref_value = jax.block_until_ready(
            reference_forward(y, params, eps))

        assert action.shape == (B, D), action.shape
        assert log_prob.shape == (B, 1), log_prob.shape
        assert value.shape == (B, 1), value.shape
        # bf16 single-pass MXU matmuls (f32 accumulation, f32 elementwise tail) checked
        # against the f32 HIGHEST reference; 2e-2 covers the bf16 rounding of the chain.
        np.testing.assert_allclose(np.asarray(action), np.asarray(ref_action),
                                   rtol=2e-2, atol=2e-2)
        np.testing.assert_allclose(np.asarray(log_prob), np.asarray(ref_logprob),
                                   rtol=2e-2, atol=2e-2)
        np.testing.assert_allclose(np.asarray(value), np.asarray(ref_value),
                                   rtol=2e-2, atol=2e-2)

    run_and_check(2, k_y, k_eps)        # B=2: single full-batch tile
    run_and_check(384, k_y2, k_eps2)    # B=384: three 128-lane tiles, exercises the grid

    print("KERNEL_OK")
</pallas_src>

<mosaic_0001>
module attributes {stable_mosaic.version = 11 : i64} {
  func.func @_sac_manifold_kernel(%arg0: i32, %arg1: memref<4x2xbf16, #tpu.memory_space<vmem>>, %arg2: memref<4x2xf32, #tpu.memory_space<vmem>>, %arg3: memref<128x4xbf16, #tpu.memory_space<vmem>>, %arg4: memref<128x1xf32, #tpu.memory_space<vmem>>, %arg5: memref<128x128xbf16, #tpu.memory_space<vmem>>, %arg6: memref<128x1xf32, #tpu.memory_space<vmem>>, %arg7: memref<9x128xbf16, #tpu.memory_space<vmem>>, %arg8: memref<9x1xf32, #tpu.memory_space<vmem>>, %arg9: memref<6x2xf32, #tpu.memory_space<vmem>>) attributes {dimension_semantics = [#tpu.dimension_semantics<parallel>], iteration_bounds = array<i64: 1>, scalar_prefetch = 0 : i64, scratch_operands = 0 : i64, tpu.core_type = #tpu.core_type<tc>, window_params = [{transform_indices = @transform_0, window_bounds = array<i64: 4, 2>}, {transform_indices = @transform_1, window_bounds = array<i64: 4, 2>}, {pipeline_mode = #tpu.pipeline_mode<synchronous>, transform_indices = @transform_2, window_bounds = array<i64: 128, 4>}, {pipeline_mode = #tpu.pipeline_mode<synchronous>, transform_indices = @transform_3, window_bounds = array<i64: 128, 1>}, {pipeline_mode = #tpu.pipeline_mode<synchronous>, transform_indices = @transform_4, window_bounds = array<i64: 128, 128>}, {pipeline_mode = #tpu.pipeline_mode<synchronous>, transform_indices = @transform_5, window_bounds = array<i64: 128, 1>}, {pipeline_mode = #tpu.pipeline_mode<synchronous>, transform_indices = @transform_6, window_bounds = array<i64: 9, 128>}, {pipeline_mode = #tpu.pipeline_mode<synchronous>, transform_indices = @transform_7, window_bounds = array<i64: 9, 1>}, {transform_indices = @transform_8, window_bounds = array<i64: 6, 2>}]} {
    %c0 = arith.constant 0 : index
    %c0_0 = arith.constant 0 : index
    %0 = vector.load %arg1[%c0, %c0_0] : memref<4x2xbf16, #tpu.memory_space<vmem>>, vector<4x2xbf16>
    %c0_1 = arith.constant 0 : index
    %c0_2 = arith.constant 0 : index
    %1 = vector.load %arg3[%c0_1, %c0_2] : memref<128x4xbf16, #tpu.memory_space<vmem>>, vector<128x4xbf16>
    %cst = arith.constant dense<0.000000e+00> : vector<128x2xf32>
    %2 = tpu.matmul %1, %0, %cst {dimension_numbers = #tpu.dot_dimension_numbers<[1], [0], [0], [1], [0, 0, 1, 1], [], []>} : vector<128x4xbf16>, vector<4x2xbf16>, vector<128x2xf32> -> vector<128x2xf32>
    %c0_3 = arith.constant 0 : index
    %c0_4 = arith.constant 0 : index
    %3 = vector.load %arg4[%c0_3, %c0_4] : memref<128x1xf32, #tpu.memory_space<vmem>>, vector<128x1xf32>
    %4 = vector.broadcast %3 : vector<128x1xf32> to vector<128x2xf32>
    %5 = arith.addf %2, %4 : vector<128x2xf32>
    %cst_5 = arith.constant 0.000000e+00 : f32
    %6 = vector.broadcast %cst_5 : f32 to vector<128x2xf32>
    %7 = arith.maximumf %5, %6 : vector<128x2xf32>
    %c0_6 = arith.constant 0 : index
    %c0_7 = arith.constant 0 : index
    %8 = vector.load %arg5[%c0_6, %c0_7] : memref<128x128xbf16, #tpu.memory_space<vmem>>, vector<128x128xbf16>
    %9 = arith.truncf %7 : vector<128x2xf32> to vector<128x2xbf16>
    %cst_8 = arith.constant dense<0.000000e+00> : vector<128x2xf32>
    %10 = tpu.matmul %8, %9, %cst_8 {dimension_numbers = #tpu.dot_dimension_numbers<[1], [0], [0], [1], [0, 0, 1, 1], [], []>} : vector<128x128xbf16>, vector<128x2xbf16>, vector<128x2xf32> -> vector<128x2xf32>
    %c0_9 = arith.constant 0 : index
    %c0_10 = arith.constant 0 : index
    %11 = vector.load %arg6[%c0_9, %c0_10] : memref<128x1xf32, #tpu.memory_space<vmem>>, vector<128x1xf32>
    %12 = vector.broadcast %11 : vector<128x1xf32> to vector<128x2xf32>
    %13 = arith.addf %10, %12 : vector<128x2xf32>
    %cst_11 = arith.constant 0.000000e+00 : f32
    %14 = vector.broadcast %cst_11 : f32 to vector<128x2xf32>
    %15 = arith.maximumf %13, %14 : vector<128x2xf32>
    %c0_12 = arith.constant 0 : index
    %c0_13 = arith.constant 0 : index
    %16 = vector.load %arg7[%c0_12, %c0_13] : memref<9x128xbf16, #tpu.memory_space<vmem>>, vector<9x128xbf16>
    %17 = arith.truncf %15 : vector<128x2xf32> to vector<128x2xbf16>
    %cst_14 = arith.constant dense<0.000000e+00> : vector<9x2xf32>
    %18 = tpu.matmul %16, %17, %cst_14 {dimension_numbers = #tpu.dot_dimension_numbers<[1], [0], [0], [1], [0, 0, 1, 1], [], []>} : vector<9x128xbf16>, vector<128x2xbf16>, vector<9x2xf32> -> vector<9x2xf32>
    %c0_15 = arith.constant 0 : index
    %c0_16 = arith.constant 0 : index
    %19 = vector.load %arg8[%c0_15, %c0_16] : memref<9x1xf32, #tpu.memory_space<vmem>>, vector<9x1xf32>
    %20 = vector.broadcast %19 : vector<9x1xf32> to vector<9x2xf32>
    %21 = arith.addf %18, %20 : vector<9x2xf32>
    %22 = vector.extract_strided_slice %21 {offsets = [0, 0], sizes = [4, 2], strides = [1, 1]} : vector<9x2xf32> to vector<4x2xf32>
    %23 = math.tanh %22 : vector<4x2xf32>
    %24 = math.absf %23 : vector<4x2xf32>
    %cst_17 = arith.constant 0x7F800000 : f32
    %25 = vector.broadcast %cst_17 : f32 to vector<4x2xf32>
    %26 = arith.cmpf olt, %24, %25 : vector<4x2xf32>
    %cst_18 = arith.constant 0.000000e+00 : f32
    %27 = vector.broadcast %cst_18 : f32 to vector<4x2xf32>
    %28 = arith.select %26, %23, %27 : vector<4x2xi1>, vector<4x2xf32>
    %29 = vector.extract_strided_slice %21 {offsets = [4, 0], sizes = [4, 2], strides = [1, 1]} : vector<9x2xf32> to vector<4x2xf32>
    %30 = math.absf %29 : vector<4x2xf32>
    %cst_19 = arith.constant 0x7F800000 : f32
    %31 = vector.broadcast %cst_19 : f32 to vector<4x2xf32>
    %32 = arith.cmpf olt, %30, %31 : vector<4x2xf32>
    %cst_20 = arith.constant 0.000000e+00 : f32
    %33 = vector.broadcast %cst_20 : f32 to vector<4x2xf32>
    %34 = arith.select %32, %29, %33 : vector<4x2xi1>, vector<4x2xf32>
    %cst_21 = arith.constant 0.000000e+00 : f32
    %35 = vector.broadcast %cst_21 : f32 to vector<4x2xf32>
    %36 = arith.maximumf %34, %35 : vector<4x2xf32>
    %37 = math.absf %34 : vector<4x2xf32>
    %cst_22 = arith.constant 0.000000e+00 : f32
    %38 = vector.broadcast %cst_22 : f32 to vector<4x2xf32>
    %39 = arith.subf %38, %37 : vector<4x2xf32>
    %40 = math.exp %39 : vector<4x2xf32>
    %41 = math.log1p %40 : vector<4x2xf32>
    %42 = arith.addf %36, %41 : vector<4x2xf32>
    %c0_23 = arith.constant 0 : index
    %c0_24 = arith.constant 0 : index
    %43 = vector.load %arg2[%c0_23, %c0_24] : memref<4x2xf32, #tpu.memory_space<vmem>>, vector<4x2xf32>
    %44 = arith.mulf %42, %43 : vector<4x2xf32>
    %45 = arith.addf %28, %44 : vector<4x2xf32>
    %46 = math.tanh %45 : vector<4x2xf32>
    %47 = arith.mulf %43, %43 : vector<4x2xf32>
    %cst_25 = arith.constant -5.000000e-01 : f32
    %48 = vector.broadcast %cst_25 : f32 to vector<4x2xf32>
    %49 = arith.mulf %48, %47 : vector<4x2xf32>
    %50 = math.log %42 : vector<4x2xf32>
    %51 = arith.subf %49, %50 : vector<4x2xf32>
    %cst_26 = arith.constant 0.918938517 : f32
    %52 = vector.broadcast %cst_26 : f32 to vector<4x2xf32>
    %53 = arith.subf %51, %52 : vector<4x2xf32>
    %54 = arith.mulf %46, %46 : vector<4x2xf32>
    %cst_27 = arith.constant 1.000000e+00 : f32
    %55 = vector.broadcast %cst_27 : f32 to vector<4x2xf32>
    %56 = arith.subf %55, %54 : vector<4x2xf32>
    %cst_28 = arith.constant 9.99999997E-7 : f32
    %57 = vector.broadcast %cst_28 : f32 to vector<4x2xf32>
    %58 = arith.addf %56, %57 : vector<4x2xf32>
    %59 = math.log %58 : vector<4x2xf32>
    %60 = arith.subf %53, %59 : vector<4x2xf32>
    %cst_29 = arith.constant dense<0.000000e+00> : vector<2xf32>
    %61 = vector.multi_reduction <add>, %60, %cst_29 [0] : vector<4x2xf32> to vector<2xf32>
    %62 = vector.shape_cast %61 : vector<2xf32> to vector<1x2xf32>
    %c0_30 = arith.constant 0 : index
    %c0_31 = arith.constant 0 : index
    %63 = vector.load %arg9[%c0_30, %c0_31] : memref<6x2xf32, #tpu.memory_space<vmem>>, vector<4x2xf32>
    tpu.vector_store %arg9[%c0_30, %c0_31], %46 {strides = array<i32>} : memref<6x2xf32, #tpu.memory_space<vmem>>, vector<4x2xf32>,
    %c4 = arith.constant 4 : index
    %c0_32 = arith.constant 0 : index
    %64 = vector.load %arg9[%c4, %c0_32] : memref<6x2xf32, #tpu.memory_space<vmem>>, vector<1x2xf32>
    tpu.vector_store %arg9[%c4, %c0_32], %62 {strides = array<i32>} : memref<6x2xf32, #tpu.memory_space<vmem>>, vector<1x2xf32>,
    %65 = vector.extract_strided_slice %21 {offsets = [8, 0], sizes = [1, 2], strides = [1, 1]} : vector<9x2xf32> to vector<1x2xf32>
    %c5 = arith.constant 5 : index
    %c0_33 = arith.constant 0 : index
    %66 = vector.load %arg9[%c5, %c0_33] : memref<6x2xf32, #tpu.memory_space<vmem>>, vector<1x2xf32>
    tpu.vector_store %arg9[%c5, %c0_33], %65 {strides = array<i32>} : memref<6x2xf32, #tpu.memory_space<vmem>>, vector<1x2xf32>,
    return
  }
  func.func @transform_0(%arg0: i32) -> (i32, i32) {
    %c0_i32 = arith.constant 0 : i32
    %c0_i32_0 = arith.constant 0 : i32
    return %c0_i32, %arg0 : i32, i32
  }
  func.func @transform_1(%arg0: i32) -> (i32, i32) {
    %c0_i32 = arith.constant 0 : i32
    %c0_i32_0 = arith.constant 0 : i32
    return %c0_i32, %arg0 : i32, i32
  }
  func.func @transform_2(%arg0: i32) -> (i32, i32) {
    %c0_i32 = arith.constant 0 : i32
    %c0_i32_0 = arith.constant 0 : i32
    %c0_i32_1 = arith.constant 0 : i32
    return %c0_i32, %c0_i32_0 : i32, i32
  }
  func.func @transform_3(%arg0: i32) -> (i32, i32) {
    %c0_i32 = arith.constant 0 : i32
    %c0_i32_0 = arith.constant 0 : i32
    %c0_i32_1 = arith.constant 0 : i32
    return %c0_i32, %c0_i32_0 : i32, i32
  }
  func.func @transform_4(%arg0: i32) -> (i32, i32) {
    %c0_i32 = arith.constant 0 : i32
    %c0_i32_0 = arith.constant 0 : i32
    %c0_i32_1 = arith.constant 0 : i32
    return %c0_i32, %c0_i32_0 : i32, i32
  }
  func.func @transform_5(%arg0: i32) -> (i32, i32) {
    %c0_i32 = arith.constant 0 : i32
    %c0_i32_0 = arith.constant 0 : i32
    %c0_i32_1 = arith.constant 0 : i32
    return %c0_i32, %c0_i32_0 : i32, i32
  }
  func.func @transform_6(%arg0: i32) -> (i32, i32) {
    %c0_i32 = arith.constant 0 : i32
    %c0_i32_0 = arith.constant 0 : i32
    %c0_i32_1 = arith.constant 0 : i32
    return %c0_i32, %c0_i32_0 : i32, i32
  }
  func.func @transform_7(%arg0: i32) -> (i32, i32) {
    %c0_i32 = arith.constant 0 : i32
    %c0_i32_0 = arith.constant 0 : i32
    %c0_i32_1 = arith.constant 0 : i32
    return %c0_i32, %c0_i32_0 : i32, i32
  }
  func.func @transform_8(%arg0: i32) -> (i32, i32) {
    %c0_i32 = arith.constant 0 : i32
    %c0_i32_0 = arith.constant 0 : i32
    return %c0_i32, %arg0 : i32, i32
  }
}

</mosaic_0001>

<llo_original>
// kernel: sac_manifold_forward.1
$region0: #{sac_manifold_forward.1}
  #allocation0 [shape = 'u32[]', space=smem, size = 0x4, offset = 0x4, fixed_abs, tag = 'smem constant byte address 0x4 - core index']
  #allocation1 [shape = 'u32[72,128]{1,0:T(1,128)}', space=vmem, size = 0x9000, scoped, tag = 'internal scratch']
  %s0 = inlined_call_operand.vmem [shape: bf16[4,2], index: 0, kind: input, shape index: {}]
  %s1 = inlined_call_operand.vmem [shape: f32[4,2], index: 1, kind: input, shape index: {}]
  %s2 = inlined_call_operand.vmem [shape: bf16[128,4], index: 2, kind: input, shape index: {}]
  %s3 = inlined_call_operand.vmem [shape: f32[128,1], index: 3, kind: input, shape index: {}]
  %s4 = inlined_call_operand.vmem [shape: bf16[128,128], index: 4, kind: input, shape index: {}]
  %s5 = inlined_call_operand.vmem [shape: f32[128,1], index: 5, kind: input, shape index: {}]
  %s6 = inlined_call_operand.vmem [shape: bf16[9,128], index: 6, kind: input, shape index: {}]
  %s7 = inlined_call_operand.vmem [shape: f32[9,1], index: 7, kind: input, shape index: {}]
  %s8 = inlined_call_operand.vmem [shape: f32[6,2], index: 8, kind: output, shape index: {}]
  %s9 = sld [smem:[#allocation0]]
  $region42: #{sac_manifold_forward.1} parent=0
    _
  %s11 = ssub.s32 1, %s9
  %s12 = scalar_select 0, %s11, %s9
  // Predicated region
  $region2: #{sac_manifold_forward.1} parent=0 // pred_check
    _
  $region3: #{sac_manifold_forward.1} parent=0 // pred_check_branch
    %14 = sbr.rel (0) target = $region5
  $region4: #{sac_manifold_forward.1} parent=0 // pred_region
    _
  $region5: #{sac_manifold_forward.1} parent=0 // pred_fallthru
    _
  // Predicated region
  $region6: #{sac_manifold_forward.1} parent=0 // pred_check
    _
  $region7: #{sac_manifold_forward.1} parent=0 // pred_check_branch
    %16 = sbr.rel (0) target = $region9
  $region8: #{sac_manifold_forward.1} parent=0 // pred_region
    _
  $region9: #{sac_manifold_forward.1} parent=0 // pred_fallthru
    _
  // Predicated region
  $region10: #{sac_manifold_forward.1} parent=0 // pred_check
    _
  $region11: #{sac_manifold_forward.1} parent=0 // pred_check_branch
    %18 = sbr.rel (0) target = $region13
  $region12: #{sac_manifold_forward.1} parent=0 // pred_region
    _
  $region13: #{sac_manifold_forward.1} parent=0 // pred_fallthru
    _
  // Predicated region
  $region14: #{sac_manifold_forward.1} parent=0 // pred_check
    _
  $region15: #{sac_manifold_forward.1} parent=0 // pred_check_branch
    %20 = sbr.rel (0) target = $region17
  $region16: #{sac_manifold_forward.1} parent=0 // pred_region
    _
  $region17: #{sac_manifold_forward.1} parent=0 // pred_fallthru
    _
  // Predicated region
  $region18: #{sac_manifold_forward.1} parent=0 // pred_check
    _
  $region19: #{sac_manifold_forward.1} parent=0 // pred_check_branch
    %22 = sbr.rel (0) target = $region21
  $region20: #{sac_manifold_forward.1} parent=0 // pred_region
    _
  $region21: #{sac_manifold_forward.1} parent=0 // pred_fallthru
    _
  // Predicated region
  $region22: #{sac_manifold_forward.1} parent=0 // pred_check
    _
  $region23: #{sac_manifold_forward.1} parent=0 // pred_check_branch
    %24 = sbr.rel (0) target = $region25
  $region24: #{sac_manifold_forward.1} parent=0 // pred_region
    _
  $region25: #{sac_manifold_forward.1} parent=0 // pred_fallthru
    _
  // Predicated region
  $region26: #{sac_manifold_forward.1} parent=0 // pred_check
    _
  $region27: #{sac_manifold_forward.1} parent=0 // pred_check_branch
    %26 = sbr.rel (0) target = $region29
  $region28: #{sac_manifold_forward.1} parent=0 // pred_region
    _
  $region29: #{sac_manifold_forward.1} parent=0 // pred_fallthru
    _
  // Predicated region
  $region30: #{sac_manifold_forward.1} parent=0 // pred_check
    _
  $region31: #{sac_manifold_forward.1} parent=0 // pred_check_branch
    %28 = sbr.rel (0) target = $region33
  $region32: #{sac_manifold_forward.1} parent=0 // pred_region
    _
  $region33: #{sac_manifold_forward.1} parent=0 // pred_fallthru
    _
  %v30 = vld [vmem:[%s0] sm:$0x3]
  %v31 = vld [vmem:[%s2] sm:$0xf]
  %v32 = vld [vmem:[%s2 + $0x4] sm:$0xf]
  %v33 = vld [vmem:[%s2 + $0x8] sm:$0xf]
  %v34 = vld [vmem:[%s2 + $0xc] sm:$0xf]
  %v35 = vld [vmem:[%s2 + $0x10] sm:$0xf]
  %v36 = vld [vmem:[%s2 + $0x14] sm:$0xf]
  %v37 = vld [vmem:[%s2 + $0x18] sm:$0xf]
  %v38 = vld [vmem:[%s2 + $0x1c] sm:$0xf]
  %v39 = vld [vmem:[%s2 + $0x20] sm:$0xf]
  %v40 = vld [vmem:[%s2 + $0x24] sm:$0xf]
  %v41 = vld [vmem:[%s2 + $0x28] sm:$0xf]
  %v42 = vld [vmem:[%s2 + $0x2c] sm:$0xf]
  %v43 = vld [vmem:[%s2 + $0x30] sm:$0xf]
  %v44 = vld [vmem:[%s2 + $0x34] sm:$0xf]
  %v45 = vld [vmem:[%s2 + $0x38] sm:$0xf]
  %v46 = vld [vmem:[%s2 + $0x3c] sm:$0xf]
  %v47 = vld [vmem:[%s3] sm:$0xff]
  %v48 = vld [vmem:[%s3 + $0x8] sm:$0xff]
  %v49 = vld [vmem:[%s3 + $0x10] sm:$0xff]
  %v50 = vld [vmem:[%s3 + $0x18] sm:$0xff]
  %v51 = vld [vmem:[%s3 + $0x20] sm:$0xff]
  %v52 = vld [vmem:[%s3 + $0x28] sm:$0xff]
  %v53 = vld [vmem:[%s3 + $0x30] sm:$0xff]
  %v54 = vld [vmem:[%s3 + $0x38] sm:$0xff]
  %v55 = vld [vmem:[%s3 + $0x40] sm:$0xff]
  %v56 = vld [vmem:[%s3 + $0x48] sm:$0xff]
  %v57 = vld [vmem:[%s3 + $0x50] sm:$0xff]
  %v58 = vld [vmem:[%s3 + $0x58] sm:$0xff]
  %v59 = vld [vmem:[%s3 + $0x60] sm:$0xff]
  %v60 = vld [vmem:[%s3 + $0x68] sm:$0xff]
  %v61 = vld [vmem:[%s3 + $0x70] sm:$0xff]
  %v62 = vld [vmem:[%s3 + $0x78] sm:$0xff]
  %64 = vset.pattern.permute.xlu0 0
  %65 = vperm.xlu0 %64, %v47
  %v66 = vpop.permute.xlu0 %65
  %69 = vset.pattern.permute.xlu0 0
  %70 = vperm.xlu0 %69, %v48
  %v71 = vpop.permute.xlu0 %70
  %74 = vset.pattern.permute.xlu0 0
  %75 = vperm.xlu0 %74, %v49
  %v76 = vpop.permute.xlu0 %75
  %79 = vset.pattern.permute.xlu0 0
  %80 = vperm.xlu0 %79, %v50
  %v81 = vpop.permute.xlu0 %80
  %84 = vset.pattern.permute.xlu0 0
  %85 = vperm.xlu0 %84, %v51
  %v86 = vpop.permute.xlu0 %85
  %89 = vset.pattern.permute.xlu0 0
  %90 = vperm.xlu0 %89, %v52
  %v91 = vpop.permute.xlu0 %90
  %94 = vset.pattern.permute.xlu0 0
  %95 = vperm.xlu0 %94, %v53
  %v96 = vpop.permute.xlu0 %95
  %99 = vset.pattern.permute.xlu0 0
  %100 = vperm.xlu0 %99, %v54
  %v101 = vpop.permute.xlu0 %100
  %104 = vset.pattern.permute.xlu0 0
  %105 = vperm.xlu0 %104, %v55
  %v106 = vpop.permute.xlu0 %105
  %109 = vset.pattern.permute.xlu0 0
  %110 = vperm.xlu0 %109, %v56
  %v111 = vpop.permute.xlu0 %110
  %114 = vset.pattern.permute.xlu0 0
  %115 = vperm.xlu0 %114, %v57
  %v116 = vpop.permute.xlu0 %115
  %119 = vset.pattern.permute.xlu0 0
  %120 = vperm.xlu0 %119, %v58
  %v121 = vpop.permute.xlu0 %120
  %124 = vset.pattern.permute.xlu0 0
  %125 = vperm.xlu0 %124, %v59
  %v126 = vpop.permute.xlu0 %125
  %129 = vset.pattern.permute.xlu0 0
  %130 = vperm.xlu0 %129, %v60
  %v131 = vpop.permute.xlu0 %130
  %134 = vset.pattern.permute.xlu0 0
  %135 = vperm.xlu0 %134, %v61
  %v136 = vpop.permute.xlu0 %135
  %139 = vset.pattern.permute.xlu0 0
  %140 = vperm.xlu0 %139, %v62
  %v141 = vpop.permute.xlu0 %140
  %v159 = vunpack.c.l.b16 %v31
  %v160 = vunpack.c.l.b16 %v32
  %v161 = vunpack.c.l.b16 %v33
  %v162 = vunpack.c.l.b16 %v34
  %v163 = vunpack.c.l.b16 %v35
  %v164 = vunpack.c.l.b16 %v36
  %v165 = vunpack.c.l.b16 %v37
  %v166 = vunpack.c.l.b16 %v38
  %v167 = vunpack.c.l.b16 %v39
  %v168 = vunpack.c.l.b16 %v40
  %v169 = vunpack.c.l.b16 %v41
  %v170 = vunpack.c.l.b16 %v42
  %v171 = vunpack.c.l.b16 %v43
  %v172 = vunpack.c.l.b16 %v44
  %v173 = vunpack.c.l.b16 %v45
  %v174 = vunpack.c.l.b16 %v46
  %v175 = vpack.c.b16 %v160, %v159
  %v176 = vpack.c.b16 %v162, %v161
  %v177 = vpack.c.b16 %v164, %v163
  %v178 = vpack.c.b16 %v166, %v165
  %v179 = vpack.c.b16 %v168, %v167
  %v180 = vpack.c.b16 %v170, %v169
  %v181 = vpack.c.b16 %v172, %v171
  %v182 = vpack.c.b16 %v174, %v173
  %vm183 = vcmask 31744
  %v185 = vsel %vm183, %v175, 0
  %v188 = vsel %vm183, %v176, 0
  %v191 = vsel %vm183, %v177, 0
  %v194 = vsel %vm183, %v178, 0
  %v197 = vsel %vm183, %v179, 0
  %v200 = vsel %vm183, %v180, 0
  %v203 = vsel %vm183, %v181, 0
  %v206 = vsel %vm183, %v182, 0
  %vm208 = vcmask 1041408
  %v210 = vsel %vm208, %v30, 0
  %212 = vmatpush.bf16.msra.mxu0 0
  %213 = vmatpush.bf16.msra.mxu0 0
  %214 = vmatpush.bf16.msra.mxu0 0
  %215 = vmatpush.bf16.msra.mxu0 0
  %216 = vmatpush.bf16.msra.mxu0 0
  %217 = vmatpush.bf16.msra.mxu0 0
  %218 = vmatpush.bf16.msra.mxu0 0
  %219 = vmatpush.bf16.msra.mxu0 %v210
  %220 = vmatmul.bf16.gmra.mxu0 %v185
  %v221 = vpop.f32.mrf.mxu0
  %v222 = vadd.f32 %v66, %v221
  %v223 = vpop.f32.mrf.mxu0
  %v224 = vadd.f32 %v71, %v223
  %225 = vmatmul.bf16.gmra.mxu0 %v188
  %v226 = vpop.f32.mrf.mxu0
  %v227 = vadd.f32 %v76, %v226
  %v228 = vpop.f32.mrf.mxu0
  %v229 = vadd.f32 %v81, %v228
  %230 = vmatmul.bf16.gmra.mxu0 %v191
  %v231 = vpop.f32.mrf.mxu0
  %v232 = vadd.f32 %v86, %v231
  %v233 = vpop.f32.mrf.mxu0
  %v234 = vadd.f32 %v91, %v233
  %235 = vmatmul.bf16.gmra.mxu0 %v194
  %v236 = vpop.f32.mrf.mxu0
  %v237 = vadd.f32 %v96, %v236
  %v238 = vpop.f32.mrf.mxu0
  %v239 = vadd.f32 %v101, %v238
  %240 = vmatmul.bf16.gmra.mxu0 %v197
  %v241 = vpop.f32.mrf.mxu0
  %v242 = vadd.f32 %v106, %v241
  %v243 = vpop.f32.mrf.mxu0
  %v244 = vadd.f32 %v111, %v243
  %245 = vmatmul.bf16.gmra.mxu0 %v200
  %v246 = vpop.f32.mrf.mxu0
  %v247 = vadd.f32 %v116, %v246
  %v248 = vpop.f32.mrf.mxu0
  %v249 = vadd.f32 %v121, %v248
  %250 = vmatmul.bf16.gmra.mxu0 %v203
  %v251 = vpop.f32.mrf.mxu0
  %v252 = vadd.f32 %v126, %v251
  %v253 = vpop.f32.mrf.mxu0
  %v254 = vadd.f32 %v131, %v253
  %255 = vmatmul.bf16.gmra.mxu0 %v206
  %v256 = vpop.f32.mrf.mxu0
  %v257 = vadd.f32 %v136, %v256
  %v258 = vpop.f32.mrf.mxu0
  %v259 = vadd.f32 %v141, %v258
  %260 = vdwg.mxu0
  %v261 = vmax.f32 %v222, 0.0
  %v262 = vmax.f32 %v224, 0.0
  %v263 = vmax.f32 %v227, 0.0
  %v264 = vmax.f32 %v229, 0.0
  %v265 = vmax.f32 %v232, 0.0
  %v266 = vmax.f32 %v234, 0.0
  %v267 = vmax.f32 %v237, 0.0
  %v268 = vmax.f32 %v239, 0.0
  %v269 = vmax.f32 %v242, 0.0
  %v270 = vmax.f32 %v244, 0.0
  %v271 = vmax.f32 %v247, 0.0
  %v272 = vmax.f32 %v249, 0.0
  %v273 = vmax.f32 %v252, 0.0
  %v274 = vmax.f32 %v254, 0.0
  %v275 = vmax.f32 %v257, 0.0
  %v276 = vmax.f32 %v259, 0.0
  %v277 = vld [vmem:[%s4] sm:$0xf]
  %v278 = vld [vmem:[%s4 + $0x4] sm:$0xf]
  %v279 = vld [vmem:[%s4 + $0x8] sm:$0xf]
  %v280 = vld [vmem:[%s4 + $0xc] sm:$0xf]
  %v281 = vld [vmem:[%s4 + $0x10] sm:$0xf]
  %v282 = vld [vmem:[%s4 + $0x14] sm:$0xf]
  %v283 = vld [vmem:[%s4 + $0x18] sm:$0xf]
  %v284 = vld [vmem:[%s4 + $0x1c] sm:$0xf]
  %v285 = vld [vmem:[%s4 + $0x20] sm:$0xf]
  %v286 = vld [vmem:[%s4 + $0x24] sm:$0xf]
  %v287 = vld [vmem:[%s4 + $0x28] sm:$0xf]
  %v288 = vld [vmem:[%s4 + $0x2c] sm:$0xf]
  %v289 = vld [vmem:[%s4 + $0x30] sm:$0xf]
  %v290 = vld [vmem:[%s4 + $0x34] sm:$0xf]
  %v291 = vld [vmem:[%s4 + $0x38] sm:$0xf]
  %v292 = vld [vmem:[%s4 + $0x3c] sm:$0xf]
  %v293 = vpack.c.bf16 %v262, %v261
  %v294 = vpack.c.bf16 %v264, %v263
  %v295 = vpack.c.bf16 %v266, %v265
  %v296 = vpack.c.bf16 %v268, %v267
  %v297 = vpack.c.bf16 %v270, %v269
  %v298 = vpack.c.bf16 %v272, %v271
  %v299 = vpack.c.bf16 %v274, %v273
  %v300 = vpack.c.bf16 %v276, %v275
  %v301 = vld [vmem:[%s5] sm:$0xff]
  %v302 = vld [vmem:[%s5 + $0x8] sm:$0xff]
  %v303 = vld [vmem:[%s5 + $0x10] sm:$0xff]
  %v304 = vld [vmem:[%s5 + $0x18] sm:$0xff]
  %v305 = vld [vmem:[%s5 + $0x20] sm:$0xff]
  %v306 = vld [vmem:[%s5 + $0x28] sm:$0xff]
  %v307 = vld [vmem:[%s5 + $0x30] sm:$0xff]
  %v308 = vld [vmem:[%s5 + $0x38] sm:$0xff]
  %v309 = vld [vmem:[%s5 + $0x40] sm:$0xff]
  %v310 = vld [vmem:[%s5 + $0x48] sm:$0xff]
  %v311 = vld [vmem:[%s5 + $0x50] sm:$0xff]
  %v312 = vld [vmem:[%s5 + $0x58] sm:$0xff]
  %v313 = vld [vmem:[%s5 + $0x60] sm:$0xff]
  %v314 = vld [vmem:[%s5 + $0x68] sm:$0xff]
  %v315 = vld [vmem:[%s5 + $0x70] sm:$0xff]
  %v316 = vld [vmem:[%s5 + $0x78] sm:$0xff]
  %318 = vset.pattern.permute.xlu0 0
  %319 = vperm.xlu0 %318, %v301
  %v320 = vpop.permute.xlu0 %319
  %323 = vset.pattern.permute.xlu0 0
  %324 = vperm.xlu0 %323, %v302
  %v325 = vpop.permute.xlu0 %324
  %328 = vset.pattern.permute.xlu0 0
  %329 = vperm.xlu0 %328, %v303
  %v330 = vpop.permute.xlu0 %329
  %333 = vset.pattern.permute.xlu0 0
  %334 = vperm.xlu0 %333, %v304
  %v335 = vpop.permute.xlu0 %334
  %338 = vset.pattern.permute.xlu0 0
  %339 = vperm.xlu0 %338, %v305
  %v340 = vpop.permute.xlu0 %339
  %343 = vset.pattern.permute.xlu0 0
  %344 = vperm.xlu0 %343, %v306
  %v345 = vpop.permute.xlu0 %344
  %348 = vset.pattern.permute.xlu0 0
  %349 = vperm.xlu0 %348, %v307
  %v350 = vpop.permute.xlu0 %349
  %353 = vset.pattern.permute.xlu0 0
  %354 = vperm.xlu0 %353, %v308
  %v355 = vpop.permute.xlu0 %354
  %358 = vset.pattern.permute.xlu0 0
  %359 = vperm.xlu0 %358, %v309
  %v360 = vpop.permute.xlu0 %359
  %363 = vset.pattern.permute.xlu0 0
  %364 = vperm.xlu0 %363, %v310
  %v365 = vpop.permute.xlu0 %364
  %368 = vset.pattern.permute.xlu0 0
  %369 = vperm.xlu0 %368, %v311
  %v370 = vpop.permute.xlu0 %369
  %373 = vset.pattern.permute.xlu0 0
  %374 = vperm.xlu0 %373, %v312
  %v375 = vpop.permute.xlu0 %374
  %378 = vset.pattern.permute.xlu0 0
  %379 = vperm.xlu0 %378, %v313
  %v380 = vpop.permute.xlu0 %379
  %383 = vset.pattern.permute.xlu0 0
  %384 = vperm.xlu0 %383, %v314
  %v385 = vpop.permute.xlu0 %384
  %388 = vset.pattern.permute.xlu0 0
  %389 = vperm.xlu0 %388, %v315
  %v390 = vpop.permute.xlu0 %389
  %393 = vset.pattern.permute.xlu0 0
  %394 = vperm.xlu0 %393, %v316
  %v395 = vpop.permute.xlu0 %394
  %v413 = vunpack.c.l.b16 %v277
  %v414 = vunpack.c.l.b16 %v278
  %v415 = vunpack.c.l.b16 %v279
  %v416 = vunpack.c.l.b16 %v280
  %v417 = vunpack.c.l.b16 %v281
  %v418 = vunpack.c.l.b16 %v282
  %v419 = vunpack.c.l.b16 %v283
  %v420 = vunpack.c.l.b16 %v284
  %v421 = vunpack.c.l.b16 %v285
  %v422 = vunpack.c.l.b16 %v286
  %v423 = vunpack.c.l.b16 %v287
  %v424 = vunpack.c.l.b16 %v288
  %v425 = vunpack.c.l.b16 %v289
  %v426 = vunpack.c.l.b16 %v290
  %v427 = vunpack.c.l.b16 %v291
  %v428 = vunpack.c.l.b16 %v292
  %v429 = vpack.c.b16 %v414, %v413
  %v430 = vpack.c.b16 %v416, %v415
  %v431 = vpack.c.b16 %v418, %v417
  %v432 = vpack.c.b16 %v420, %v419
  %v433 = vpack.c.b16 %v422, %v421
  %v434 = vpack.c.b16 %v424, %v423
  %v435 = vpack.c.b16 %v426, %v425
  %v436 = vpack.c.b16 %v428, %v427
  %445 = vmatpush.bf16.msra.mxu0 %v300
  %446 = vmatpush.bf16.msra.mxu0 %v299
  %447 = vmatpush.bf16.msra.mxu0 %v298
  %448 = vmatpush.bf16.msra.mxu0 %v297
  %449 = vmatpush.bf16.msra.mxu0 %v296
  %450 = vmatpush.bf16.msra.mxu0 %v295
  %451 = vmatpush.bf16.msra.mxu0 %v294
  %452 = vmatpush.bf16.msra.mxu0 %v293
  %453 = vmatmul.bf16.gmra.mxu0 %v429
  %v454 = vpop.f32.mrf.mxu0
  %v455 = vadd.f32 %v320, %v454
  %v456 = vpop.f32.mrf.mxu0
  %v457 = vadd.f32 %v325, %v456
  %458 = vmatmul.bf16.gmra.mxu0 %v430
  %v459 = vpop.f32.mrf.mxu0
  %v460 = vadd.f32 %v330, %v459
  %v461 = vpop.f32.mrf.mxu0
  %v462 = vadd.f32 %v335, %v461
  %463 = vmatmul.bf16.gmra.mxu0 %v431
  %v464 = vpop.f32.mrf.mxu0
  %v465 = vadd.f32 %v340, %v464
  %v466 = vpop.f32.mrf.mxu0
  %v467 = vadd.f32 %v345, %v466
  %468 = vmatmul.bf16.gmra.mxu0 %v432
  %v469 = vpop.f32.mrf.mxu0
  %v470 = vadd.f32 %v350, %v469
  %v471 = vpop.f32.mrf.mxu0
  %v472 = vadd.f32 %v355, %v471
  %473 = vmatmul.bf16.gmra.mxu0 %v433
  %v474 = vpop.f32.mrf.mxu0
  %v475 = vadd.f32 %v360, %v474
  %v476 = vpop.f32.mrf.mxu0
  %v477 = vadd.f32 %v365, %v476
  %478 = vmatmul.bf16.gmra.mxu0 %v434
  %v479 = vpop.f32.mrf.mxu0
  %v480 = vadd.f32 %v370, %v479
  %v481 = vpop.f32.mrf.mxu0
  %v482 = vadd.f32 %v375, %v481
  %483 = vmatmul.bf16.gmra.mxu0 %v435
  %v484 = vpop.f32.mrf.mxu0
  %v485 = vadd.f32 %v380, %v484
  %v486 = vpop.f32.mrf.mxu0
  %v487 = vadd.f32 %v385, %v486
  %488 = vmatmul.bf16.gmra.mxu0 %v436
  %v489 = vpop.f32.mrf.mxu0
  %v490 = vadd.f32 %v390, %v489
  %v491 = vpop.f32.mrf.mxu0
  %v492 = vadd.f32 %v395, %v491
  %493 = vdwg.mxu0
  %v494 = vmax.f32 %v455, 0.0
  %v495 = vmax.f32 %v457, 0.0
  %v496 = vmax.f32 %v460, 0.0
  %v497 = vmax.f32 %v462, 0.0
  %v498 = vmax.f32 %v465, 0.0
  %v499 = vmax.f32 %v467, 0.0
  %v500 = vmax.f32 %v470, 0.0
  %v501 = vmax.f32 %v472, 0.0
  %v502 = vmax.f32 %v475, 0.0
  %v503 = vmax.f32 %v477, 0.0
  %v504 = vmax.f32 %v480, 0.0
  %v505 = vmax.f32 %v482, 0.0
  %v506 = vmax.f32 %v485, 0.0
  %v507 = vmax.f32 %v487, 0.0
  %v508 = vmax.f32 %v490, 0.0
  %v509 = vmax.f32 %v492, 0.0
  %v510 = vld [vmem:[%s6] sm:$0xf]
  %v511 = vld [vmem:[%s6 + $0x4] sm:$0x1]
  %v512 = vpack.c.bf16 %v495, %v494
  %v513 = vpack.c.bf16 %v497, %v496
  %v514 = vpack.c.bf16 %v499, %v498
  %v515 = vpack.c.bf16 %v501, %v500
  %v516 = vpack.c.bf16 %v503, %v502
  %v517 = vpack.c.bf16 %v505, %v504
  %v518 = vpack.c.bf16 %v507, %v506
  %v519 = vpack.c.bf16 %v509, %v508
  %v520 = vld [vmem:[%s7] sm:$0xff]
  %v521 = vld [vmem:[%s7 + $0x8] sm:$0x1]
  %523 = vset.pattern.permute.xlu0 0
  %524 = vperm.xlu0 %523, %v520
  %v525 = vpop.permute.xlu0 %524
  %528 = vset.pattern.permute.xlu0 0
  %529 = vperm.xlu0 %528, %v521
  %v530 = vpop.permute.xlu0 %529
  %v534 = vunpack.c.l.b16 %v510
  %v535 = vunpack.c.l.b16 %v511
  %v536 = vpack.c.b16 %v535, %v534
  %538 = vmatpush.bf16.msra.mxu0 %v519
  %539 = vmatpush.bf16.msra.mxu0 %v518
  %540 = vmatpush.bf16.msra.mxu0 %v517
  %541 = vmatpush.bf16.msra.mxu0 %v516
  %542 = vmatpush.bf16.msra.mxu0 %v515
  %543 = vmatpush.bf16.msra.mxu0 %v514
  %544 = vmatpush.bf16.msra.mxu0 %v513
  %545 = vmatpush.bf16.msra.mxu0 %v512
  %546 = vmatmul.bf16.gmra.mxu0 %v536
  %v547 = vpop.f32.mrf.mxu0
  %v548 = vadd.f32 %v525, %v547
  %v549 = vpop.f32.mrf.mxu0
  %v550 = vadd.f32 %v530, %v549
  %551 = vdwg.mxu0
  %v552 = vtanh.pop %v548
  %v553 = vand.u32 2147483647, %v552
  %vm554 = vcmp.lt.f32.partialorder %v553, inf
  %v555 = vsel %vm554, %v552, 0.0
  %v556 = vand.u32 2147483647, %v548
  %vm557 = vcmp.lt.f32.partialorder %v556, inf
  %v558 = vsel %vm557, %v548, 0.0
  %v559 = vmax.f32 %v558, 0.0
  %v560 = vand.u32 2147483647, %v558
  %v561 = vsub.f32 0.0, %v560
  %v562 = vmul.f32 %v561, 1.442695
  %v563 = vpow.pop %v562
  %v564 = vadd.f32 %v563, 1.0
  %v565 = vlog2.pop %v564
  %v566 = vmul.f32 %v565, 0.6931472
  %v567 = vmul.f32 -0.5, %v563
  %v568 = vadd.f32 %v567, 1.0
  %v569 = vmul.f32 %v568, %v563
  %v570 = vand.u32 2147483647, %v563
  %vm571 = vcmp.lt.f32.partialorder %v570, 0.0004427343
  %v572 = vsel %vm571, %v569, %v566
  %v573 = vadd.f32 %v559, %v572
  %v574 = vld [vmem:[%s1] sm:$0xf]
  %v576 = vrot.slane %v574, 4
  %v578 = vmul.f32 %v573, %v576
  %v580 = vrot.slane %v578, 4
  %v582 = vadd.f32 %v555, %v580
  %v583 = vtanh.pop %v582
  %v584 = vmul.f32 %v574, %v574
  %v585 = vmul.f32 %v584, -0.5
  %v586 = vlog2.pop %v573
  %v587 = vmul.f32 %v586, 0.6931472
  %v589 = vrot.slane %v587, 4
  %v591 = vsub.f32 %v585, %v589
  %v592 = vsub.f32 %v591, 0.9189385
  %v593 = vmul.f32 %v583, %v583
  %v594 = vsub.f32 1.0, %v593
  %v595 = vadd.f32 %v594, 1e-06
  %v596 = vlog2.pop %v595
  %v597 = vmul.f32 %v596, 0.6931472
  %v598 = vsub.f32 %v592, %v597
  %vm599 = vcmask 11264
  %v600 = vsel %vm599, %v598, 0.0
  %v601 = vrot.slane %v600, 4
  %v602 = vadd.f32 %v600, %v601
  %v603 = vrot.slane %v602, 2
  %v604 = vadd.f32 %v602, %v603
  %v605 = vrot.slane %v604, 1
  %v606 = vadd.f32 %v604, %v605
  %607 = vst.msk [vmem:[%s8] sm:$0xf] %vm599, %v583
  %vm608 = vcmask 8192
  %609 = vst.msk [vmem:[%s8 + $0x4] sm:$0x1] %vm608, %v606
  %610 = vst.msk [vmem:[%s8 + $0x5] sm:$0x1] %vm608, %v550
  // Predicated region
  $region34: #{sac_manifold_forward.1} parent=0 // pred_check
    _
  $region35: #{sac_manifold_forward.1} parent=0 // pred_check_branch
    %612 = sbr.rel (0) target = $region37
  $region36: #{sac_manifold_forward.1} parent=0 // pred_region
    _
  $region37: #{sac_manifold_forward.1} parent=0 // pred_fallthru
    _
  // Predicated region
  $region38: #{sac_manifold_forward.1} parent=0 // pred_check
    _
  $region39: #{sac_manifold_forward.1} parent=0 // pred_check_branch
    %614 = sbr.rel (0) target = $region41
  $region40: #{sac_manifold_forward.1} parent=0 // pred_region
    _
  $region41: #{sac_manifold_forward.1} parent=0 // pred_fallthru
    _

</llo_original>
